<compile_context>
chip_gen: v6e
topology: v6e:2x2x1
jax: 0.10.0
libtpu: 0.0.40
codegen_flags: <defaults>
</compile_context>

<pallas_src>
import functools

import jax
import jax.numpy as jnp
import numpy as np
from jax.experimental import pallas as pl
from jax.experimental.pallas import tpu as pltpu


def _round_up(a: int, b: int) -> int:
    return -(-a // b) * b


def _cdiv(a: int, b: int) -> int:
    return -(-a // b)


_VMEM_LIMIT_BYTES = 32 * 1024 * 1024   # <= physical VMEM on v5e/v6e/v7x
_VMEM_BUDGET_BYTES = 20 * 1024 * 1024  # kernel-buffer budget (pessimistic count)
_RESIDENT_OMEGA_BYTES = 12 * 1024 * 1024  # 2x double-buffered omega threshold


# ---------------------------------------------------------------------------
# Fast path: omega resident in VMEM, 1-D grid over rows of x, no K reduction.
# ---------------------------------------------------------------------------
def _rff_kernel_resident(x_ref, rel_ref, omega_ref, unif_ref, o_ref):
    # (tm, K) * (1, K) feature scaling (VPU, hidden under the MXU matmul).
    x_scaled = (x_ref[...] * rel_ref[...]).astype(omega_ref.dtype)
    acc = jnp.dot(x_scaled, omega_ref[...], preferred_element_type=jnp.float32)
    # Bias add (VPU) + cos (EUP) + single plain store in the output dtype.
    o_ref[...] = jnp.cos(acc + unif_ref[...]).astype(o_ref.dtype)


@functools.partial(jax.jit, static_argnames=("tm", "out_dtype"))
def _rff_pallas_resident(x, rel2d, omega, unif2d, *, tm, out_dtype):
    M, K = x.shape
    _, N = omega.shape
    grid_m = _cdiv(M, tm)

    out_bytes = M * N * np.dtype(out_dtype).itemsize
    cost = pl.CostEstimate(
        flops=2 * M * K * N,
        transcendentals=M * N,
        bytes_accessed=(x.size * x.dtype.itemsize          # x streamed once
                        + omega.size * omega.dtype.itemsize  # omega fetched once
                        + 4 * (K + N)                         # rel + unif
                        + out_bytes),                         # output written once
    )

    return pl.pallas_call(
        _rff_kernel_resident,
        out_shape=jax.ShapeDtypeStruct((M, N), out_dtype),
        grid_spec=pltpu.PrefetchScalarGridSpec(
            num_scalar_prefetch=0,
            grid=(grid_m,),
            in_specs=[
                pl.BlockSpec((tm, K), lambda i: (i, 0)),  # x row tile (streamed)
                pl.BlockSpec((1, K), lambda i: (0, 0)),   # relevances (resident)
                pl.BlockSpec((K, N), lambda i: (0, 0)),   # omega (resident)
                pl.BlockSpec((1, N), lambda i: (0, 0)),   # unif (resident)
            ],
            out_specs=pl.BlockSpec((tm, N), lambda i: (i, 0)),
        ),
        compiler_params=pltpu.CompilerParams(
            dimension_semantics=("parallel",),
            vmem_limit_bytes=_VMEM_LIMIT_BYTES,
        ),
        cost_estimate=cost,
    )(x, rel2d, omega, unif2d)


# ---------------------------------------------------------------------------
# Tiled fallback: (i, j, k) grid with reduction last, f32 scratch accumulator,
# first-k store (no zero-init RMW), cos + store only on the last k.
# ---------------------------------------------------------------------------
def _rff_kernel_tiled(x_ref, rel_ref, omega_ref, unif_ref, o_ref, acc_ref):
    k = pl.program_id(2)
    partial = jnp.dot(
        (x_ref[...] * rel_ref[...]).astype(omega_ref.dtype),
        omega_ref[...],
        preferred_element_type=jnp.float32,
    )

    @pl.when(k == 0)
    def _():
        acc_ref[...] = partial

    @pl.when(k != 0)
    def _():
        acc_ref[...] += partial

    @pl.when(k == pl.num_programs(2) - 1)
    def _():
        o_ref[...] = jnp.cos(acc_ref[...] + unif_ref[...]).astype(o_ref.dtype)


@functools.partial(jax.jit, static_argnames=("tm", "tn", "tk", "out_dtype"))
def _rff_pallas_tiled(x, rel2d, omega, unif2d, *, tm, tn, tk, out_dtype):
    M, Kp = x.shape          # K already zero-padded to a multiple of tk
    _, N = omega.shape
    grid = (_cdiv(M, tm), _cdiv(N, tn), Kp // tk)

    out_bytes = M * N * np.dtype(out_dtype).itemsize
    cost = pl.CostEstimate(
        flops=2 * M * Kp * N,
        transcendentals=M * N,
        bytes_accessed=(x.size * x.dtype.itemsize * grid[1]            # x re-read per j
                        + omega.size * omega.dtype.itemsize * grid[0]  # omega re-read per i
                        + out_bytes),
    )

    return pl.pallas_call(
        _rff_kernel_tiled,
        out_shape=jax.ShapeDtypeStruct((M, N), out_dtype),
        grid_spec=pltpu.PrefetchScalarGridSpec(
            num_scalar_prefetch=0,
            grid=grid,
            in_specs=[
                pl.BlockSpec((tm, tk), lambda i, j, k: (i, k)),  # x tile
                pl.BlockSpec((1, tk), lambda i, j, k: (0, k)),   # relevances slice
                pl.BlockSpec((tk, tn), lambda i, j, k: (k, j)),  # omega tile
                pl.BlockSpec((1, tn), lambda i, j, k: (0, j)),   # unif slice
            ],
            out_specs=pl.BlockSpec((tm, tn), lambda i, j, k: (i, j)),
            scratch_shapes=[pltpu.VMEM((tm, tn), jnp.float32)],
        ),
        compiler_params=pltpu.CompilerParams(
            dimension_semantics=("parallel", "parallel", "arbitrary"),
            vmem_limit_bytes=_VMEM_LIMIT_BYTES,
        ),
        cost_estimate=cost,
    )(x, rel2d, omega, unif2d)


def _resident_footprint(tm, K, N, x_item, w_item, out_item):
    # Conservative: everything counted as double-buffered even though omega /
    # relevances / unif have constant block indices and are fetched once.
    return 2 * (tm * K * x_item + K * N * w_item + tm * N * out_item
                + 4 * K + 4 * N)


def rff_layer_forward(x, relevances, omega, unif, *,
                      use_bf16_matmul=False, force_path=None,
                      tm=None, tn=None, tk=None):
    """Pallas implementation of RFFLayer.forward.

    x: (M, K), relevances: (K,), omega: (K, N), unif: (N,) -> (M, N) in x.dtype.
    """
    M, K = x.shape
    K2, N = omega.shape
    assert K == K2, "x and omega in_features mismatch"

    out_dtype = x.dtype
    mm_dtype = jnp.bfloat16 if use_bf16_matmul else jnp.float32

    x_mm = x.astype(mm_dtype)
    omega_mm = omega.astype(mm_dtype)
    rel2d = relevances.reshape(1, K).astype(jnp.float32)   # 2-D for TPU layout
    unif2d = unif.reshape(1, N).astype(jnp.float32)

    x_item = np.dtype(mm_dtype).itemsize
    w_item = np.dtype(mm_dtype).itemsize
    out_item = np.dtype(out_dtype).itemsize

    # -------------------- path selection --------------------
    omega_fits = 2 * K * N * w_item <= _RESIDENT_OMEGA_BYTES
    use_resident = omega_fits if force_path is None else (force_path == "resident")

    if use_resident:
        if tm is None:
            # Largest 128-class row tile (or exact small-M block) that fits the
            # VMEM budget, minimizing edge-block waste under a cdiv grid.
            cands = [c for c in (512, 384, 256, 128) if c <= _round_up(M, 8)]
            if not cands:
                cands = [_round_up(M, 8)]
            fitting = [c for c in cands
                       if _resident_footprint(c, K, N, x_item, w_item, out_item)
                       <= _VMEM_BUDGET_BYTES]
            if fitting:
                tm = min(fitting, key=lambda c: (_cdiv(M, c) * c, -c))
            else:
                tm = 64
                while tm > 8 and (_resident_footprint(tm, K, N, x_item, w_item,
                                                      out_item)
                                  > _VMEM_BUDGET_BYTES):
                    tm //= 2
        # v7x has 2 TensorCores: keep >= 2 parallel grid steps when possible.
        if _cdiv(M, int(tm)) < 2 and int(tm) > 8:
            tm = max(8, _round_up(_cdiv(M, 2), 8))
        return _rff_pallas_resident(x_mm, rel2d, omega_mm, unif2d,
                                    tm=int(tm), out_dtype=out_dtype)

    # -------------------- tiled fallback --------------------
    if tk is None:
        tk = min(512, _round_up(K, 128))
    if tn is None:
        tn = min(512, _round_up(N, 128))
    if tm is None:
        tm = min(256, _round_up(M, 8))
    tm, tn, tk = int(tm), int(tn), int(tk)

    # Two-TensorCore guarantee: >= 2 parallel (i, j) steps; tn stays a multiple
    # of 128, tm a multiple of 8.
    if _cdiv(M, tm) * _cdiv(N, tn) < 2:
        if tn >= 256:
            tn = max(128, ((tn // 2) // 128) * 128)
        elif tm > 8:
            tm = max(8, _round_up(_cdiv(M, 2), 8))

    # Only the reduction (K) axis genuinely needs zero padding; M / N edge
    # blocks are handled by the cdiv grid and masked output writeback.
    Kp = _round_up(K, tk)
    if Kp != K:
        x_mm = jnp.pad(x_mm, ((0, 0), (0, Kp - K)))
        omega_mm = jnp.pad(omega_mm, ((0, Kp - K), (0, 0)))
        rel2d = jnp.pad(rel2d, ((0, 0), (0, Kp - K)))

    return _rff_pallas_tiled(x_mm, rel2d, omega_mm, unif2d,
                             tm=tm, tn=tn, tk=tk, out_dtype=out_dtype)


def rff_layer_reference(x, relevances, omega, unif):
    """Pure-JAX reference mirroring the PyTorch forward."""
    return jnp.cos((x * relevances) @ omega + unif)


if __name__ == "__main__":
    # Small shapes consistent with the module: (n_samples, in_features).
    n_samples, in_features, out_features = 16, 32, 256

    key = jax.random.PRNGKey(0)
    kx, komega, kunif = jax.random.split(key, 3)

    x = jax.random.normal(kx, (n_samples, in_features), dtype=jnp.float32)

    # Parameter / buffer init mirroring __init__ + reset_parameters():
    relevances = jnp.zeros((in_features,), dtype=jnp.float32)                     # constant_(0.0)
    omega = jax.random.normal(komega, (in_features, out_features), jnp.float32)   # randn sampler
    unif = jax.random.uniform(kunif, (out_features,), jnp.float32) * 2.0 * np.pi  # rand * 2*pi

    # 1) default init (relevances == 0): output = cos(unif) broadcast over rows.
    out = jax.block_until_ready(rff_layer_forward(x, relevances, omega, unif))
    ref = rff_layer_reference(x, relevances, omega, unif)
    np.testing.assert_allclose(np.asarray(out), np.asarray(ref), rtol=1e-5, atol=1e-5)

    # 2) nonzero relevances so the matmul path is exercised (resident fast path).
    relevances_nz = jnp.linspace(-1.0, 1.0, in_features, dtype=jnp.float32)
    out_nz = jax.block_until_ready(rff_layer_forward(x, relevances_nz, omega, unif))
    ref_nz = rff_layer_reference(x, relevances_nz, omega, unif)
    np.testing.assert_allclose(np.asarray(out_nz), np.asarray(ref_nz), rtol=1e-4, atol=1e-4)

    # 3) non-aligned shape: no padding copies, cdiv grid + partial edge blocks.
    M2, K2_, N2 = 37, 50, 200
    kx2, ko2, ku2 = jax.random.split(jax.random.PRNGKey(1), 3)
    x2 = jax.random.normal(kx2, (M2, K2_), jnp.float32)
    rel2 = jnp.linspace(-0.5, 0.5, K2_, dtype=jnp.float32)
    omega2 = jax.random.normal(ko2, (K2_, N2), jnp.float32)
    unif2 = jax.random.uniform(ku2, (N2,), jnp.float32) * 2.0 * np.pi
    out2 = jax.block_until_ready(rff_layer_forward(x2, rel2, omega2, unif2))
    ref2 = rff_layer_reference(x2, rel2, omega2, unif2)
    np.testing.assert_allclose(np.asarray(out2), np.asarray(ref2), rtol=1e-4, atol=1e-4)

    # 4) force the tiled fallback (multi-step K reduction, K zero-padded,
    #    partial M/N edge blocks) at a small shape to exercise that path too.
    M3, K3, N3 = 24, 200, 160
    kx3, ko3, ku3 = jax.random.split(jax.random.PRNGKey(2), 3)
    x3 = jax.random.normal(kx3, (M3, K3), jnp.float32)
    rel3 = jnp.linspace(-0.3, 0.7, K3, dtype=jnp.float32)
    omega3 = jax.random.normal(ko3, (K3, N3), jnp.float32)
    unif3 = jax.random.uniform(ku3, (N3,), jnp.float32) * 2.0 * np.pi
    out3 = jax.block_until_ready(
        rff_layer_forward(x3, rel3, omega3, unif3, force_path="tiled", tk=128))
    ref3 = rff_layer_reference(x3, rel3, omega3, unif3)
    np.testing.assert_allclose(np.asarray(out3), np.asarray(ref3), rtol=1e-4, atol=1e-4)

    # 5) opt-in bf16 MXU-input path (f32 accumulation) — loose tolerance.
    out_bf16 = jax.block_until_ready(
        rff_layer_forward(x, relevances_nz, omega, unif, use_bf16_matmul=True))
    np.testing.assert_allclose(np.asarray(out_bf16), np.asarray(ref_nz), rtol=0, atol=1e-1)

    print("KERNEL_OK")
</pallas_src>

<mosaic_0001>
module attributes {stable_mosaic.version = 11 : i64} {
  func.func @_rff_kernel_resident(%arg0: i32, %arg1: memref<8x32xf32, #tpu.memory_space<vmem>>, %arg2: memref<1x32xf32, #tpu.memory_space<vmem>>, %arg3: memref<32x256xf32, #tpu.memory_space<vmem>>, %arg4: memref<1x256xf32, #tpu.memory_space<vmem>>, %arg5: memref<8x256xf32, #tpu.memory_space<vmem>>) attributes {dimension_semantics = [#tpu.dimension_semantics<parallel>], iteration_bounds = array<i64: 2>, scalar_prefetch = 0 : i64, scratch_operands = 0 : i64, tpu.core_type = #tpu.core_type<tc>, window_params = [{transform_indices = @transform_0, window_bounds = array<i64: 8, 32>}, {pipeline_mode = #tpu.pipeline_mode<synchronous>, transform_indices = @transform_1, window_bounds = array<i64: 1, 32>}, {pipeline_mode = #tpu.pipeline_mode<synchronous>, transform_indices = @transform_2, window_bounds = array<i64: 32, 256>}, {pipeline_mode = #tpu.pipeline_mode<synchronous>, transform_indices = @transform_3, window_bounds = array<i64: 1, 256>}, {transform_indices = @transform_4, window_bounds = array<i64: 8, 256>}]} {
    %c0 = arith.constant 0 : index
    %c0_0 = arith.constant 0 : index
    %0 = vector.load %arg1[%c0, %c0_0] : memref<8x32xf32, #tpu.memory_space<vmem>>, vector<8x32xf32>
    %c0_1 = arith.constant 0 : index
    %c0_2 = arith.constant 0 : index
    %1 = vector.load %arg2[%c0_1, %c0_2] : memref<1x32xf32, #tpu.memory_space<vmem>>, vector<1x32xf32>
    %2 = vector.broadcast %1 : vector<1x32xf32> to vector<8x32xf32>
    %3 = arith.mulf %0, %2 : vector<8x32xf32>
    %c0_3 = arith.constant 0 : index
    %c0_4 = arith.constant 0 : index
    %4 = vector.load %arg3[%c0_3, %c0_4] : memref<32x256xf32, #tpu.memory_space<vmem>>, vector<32x256xf32>
    %cst = arith.constant dense<0.000000e+00> : vector<8x256xf32>
    %5 = tpu.matmul %3, %4, %cst {dimension_numbers = #tpu.dot_dimension_numbers<[1], [0], [0], [1], [0, 0, 1, 1], [], []>} : vector<8x32xf32>, vector<32x256xf32>, vector<8x256xf32> -> vector<8x256xf32>
    %c0_5 = arith.constant 0 : index
    %c0_6 = arith.constant 0 : index
    %6 = vector.load %arg4[%c0_5, %c0_6] : memref<1x256xf32, #tpu.memory_space<vmem>>, vector<1x256xf32>
    %7 = vector.broadcast %6 : vector<1x256xf32> to vector<8x256xf32>
    %8 = arith.addf %5, %7 : vector<8x256xf32>
    %9 = math.cos %8 : vector<8x256xf32>
    %c0_7 = arith.constant 0 : index
    %c0_8 = arith.constant 0 : index
    %10 = vector.load %arg5[%c0_7, %c0_8] : memref<8x256xf32, #tpu.memory_space<vmem>>, vector<8x256xf32>
    tpu.vector_store %arg5[%c0_7, %c0_8], %9 {strides = array<i32>} : memref<8x256xf32, #tpu.memory_space<vmem>>, vector<8x256xf32>,
    return
  }
  func.func @transform_0(%arg0: i32) -> (i32, i32) {
    %c0_i32 = arith.constant 0 : i32
    %c0_i32_0 = arith.constant 0 : i32
    return %arg0, %c0_i32 : i32, i32
  }
  func.func @transform_1(%arg0: i32) -> (i32, i32) {
    %c0_i32 = arith.constant 0 : i32
    %c0_i32_0 = arith.constant 0 : i32
    %c0_i32_1 = arith.constant 0 : i32
    return %c0_i32, %c0_i32_0 : i32, i32
  }
  func.func @transform_2(%arg0: i32) -> (i32, i32) {
    %c0_i32 = arith.constant 0 : i32
    %c0_i32_0 = arith.constant 0 : i32
    %c0_i32_1 = arith.constant 0 : i32
    return %c0_i32, %c0_i32_0 : i32, i32
  }
  func.func @transform_3(%arg0: i32) -> (i32, i32) {
    %c0_i32 = arith.constant 0 : i32
    %c0_i32_0 = arith.constant 0 : i32
    %c0_i32_1 = arith.constant 0 : i32
    return %c0_i32, %c0_i32_0 : i32, i32
  }
  func.func @transform_4(%arg0: i32) -> (i32, i32) {
    %c0_i32 = arith.constant 0 : i32
    %c0_i32_0 = arith.constant 0 : i32
    return %arg0, %c0_i32 : i32, i32
  }
}

</mosaic_0001>

<llo_original>
// kernel: _rff_pallas_resident.1
$region0: #{_rff_pallas_resident.1}
  #allocation0 [shape = 'u32[]', space=smem, size = 0x4, offset = 0x4, fixed_abs, tag = 'smem constant byte address 0x4 - core index']
  #allocation1 [shape = 'u32[144,128]{1,0:T(1,128)}', space=vmem, size = 0x12000, scoped, tag = 'internal scratch']
  %s0 = inlined_call_operand.hbm [shape: f32[16,32], index: 0, kind: input, shape index: {}]
  %s1 = inlined_call_operand.vmem [shape: f32[1,32], index: 1, kind: input, shape index: {}]
  %s2 = inlined_call_operand.hbm [shape: f32[32,256], index: 2, kind: input, shape index: {}]
  %s3 = inlined_call_operand.vmem [shape: f32[1,256], index: 3, kind: input, shape index: {}]
  %s4 = inlined_call_operand.hbm [shape: f32[16,256], index: 4, kind: output, shape index: {}]
  %s5 = sld [smem:[#allocation0]]
  $region57: #{_rff_pallas_resident.1} parent=0
    _
  %s7 = ssub.s32 1, %s5
  %s8 = scalar_select 0, %s7, %s5
  $region1: #{_rff_pallas_resident.1} parent=0
    #allocation2 [shape = 'u8[8192]{0}', space=vmem, size = 0x2000, scoped, tag = 'input window, operand 0']
    #allocation3 [shape = 's32[2]{0}', space=sflag, size = 0x8, scoped, tag = 'scoped memory for _rff_pallas_resident.1']
    #allocation4 [shape = 's32[2]{0}', space=sflag, size = 0x8, scoped, tag = 'scoped memory for _rff_pallas_resident.1']
    #allocation5 [shape = 'u8[32768]{0}', space=vmem, size = 0x8000, scoped, tag = 'input window, operand 2, single buffered']
    #allocation6 [shape = 's32[1]{0}', space=sflag, size = 0x4, scoped, tag = 'scoped memory for _rff_pallas_resident.1']
    #allocation7 [shape = 'u8[16384]{0}', space=vmem, size = 0x4000, scoped, tag = 'output window, operand 0']
    %9 = vsyncpa [#allocation3], 0
    %s10 = scalar_lea.sflag [#allocation3], 1
    %11 = vsyncpa %s10, 0
    %12 = vsyncpa [#allocation6], 0
    %13 = vsyncpa [#allocation4], 0
    %s14 = scalar_lea.sflag [#allocation4], 1
    %15 = vsyncpa %s14, 0
    loop: start=0, step=1, limit=4
    $region2: #{_rff_pallas_resident.1} parent=1 // loop_pre_header
      _
    $region3: #{_rff_pallas_resident.1} parent=1 // loop_header
      %s17 = sphi 0, %s21
      %p18 = scmp.ge.s32.totalorder %s17, 4
      %s27 = sphi 0, %s29
      %s30 = sphi 0, %s27
      %s31 = sphi 0, %s30
      %s47 = sphi 0, %s31
      %s51 = sphi 0, %s51
      %s53 = sphi 0, %s51
      %s54 = sphi 0, %s53
      %s68 = sphi 0, %s54
      %s72 = sphi 0, %s72
      %s74 = sphi 0, %s72
      %s75 = sphi 0, %s74
      %s89 = sphi 0, %s75
      %s93 = sphi 0, %s93
      %s95 = sphi 0, %s93
      %s96 = sphi 0, %s95
      %s110 = sphi 0, %s96
      %s116 = sphi 0, %s118
      %s119 = sphi 0, %s116
      %s120 = sphi 0, %s119
      %s136 = sphi 0, %s120
    $region4: #{_rff_pallas_resident.1} parent=1 // loop_header_branch
      %20 = sbr.rel (%p18) target = $region8
    $region5: #{_rff_pallas_resident.1} parent=1 // loop_body
      %s22 = ssub.s32 %s17, 1
      %s23 = ssub.s32 %s17, 2
      %s24 = sadd.s32 %s17, 1
      %s25 = ssub.s32 %s17, %s24
      %p26 = scmp.eq.s32.totalorder %s25, 0
      %s28 = sadd.s32 %s27, 1
      %s29 = scalar_select %p26, %s27, %s28
      %p32 = pneg %p26
      %p33 = scmp.eq.s32.totalorder %s17, 1
      %p34 = por %p32, %p33
      %p35 = scmp.ne.s32.totalorder %s27, %s30
      %p36 = scmp.eq.s32.totalorder %s17, 0
      %p37 = por %p35, %p36
      %p38 = scmp.ne.s32.totalorder %s27, %s30
      %p39 = scmp.eq.s32.totalorder %s22, 1
      %p40 = por %p38, %p39
      %p41 = scmp.ne.s32.totalorder %s30, %s31
      %p42 = scmp.eq.s32.totalorder %s22, 0
      %p43 = por %p41, %p42
      %p44 = scmp.ne.s32.totalorder %s30, %s31
      %p45 = scmp.eq.s32.totalorder %s23, 1
      %p46 = por %p44, %p45
      %p48 = scmp.ne.s32.totalorder %s31, %s47
      %p49 = scmp.eq.s32.totalorder %s23, 0
      %p50 = por %p48, %p49
      %s52 = sadd.s32 %s51, 1
      %p55 = scmp.eq.s32.totalorder %s17, 1
      %p56 = scmp.ne.s32.totalorder %s51, %s53
      %p57 = scmp.eq.s32.totalorder %s17, 0
      %p58 = por %p56, %p57
      %p59 = scmp.ne.s32.totalorder %s51, %s53
      %p60 = scmp.eq.s32.totalorder %s22, 1
      %p61 = por %p59, %p60
      %p62 = scmp.ne.s32.totalorder %s53, %s54
      %p63 = scmp.eq.s32.totalorder %s22, 0
      %p64 = por %p62, %p63
      %p65 = scmp.ne.s32.totalorder %s53, %s54
      %p66 = scmp.eq.s32.totalorder %s23, 1
      %p67 = por %p65, %p66
      %p69 = scmp.ne.s32.totalorder %s54, %s68
      %p70 = scmp.eq.s32.totalorder %s23, 0
      %p71 = por %p69, %p70
      %s73 = sadd.s32 %s72, 1
      %p76 = scmp.eq.s32.totalorder %s17, 1
      %p77 = scmp.ne.s32.totalorder %s72, %s74
      %p78 = scmp.eq.s32.totalorder %s17, 0
      %p79 = por %p77, %p78
      %p80 = scmp.ne.s32.totalorder %s72, %s74
      %p81 = scmp.eq.s32.totalorder %s22, 1
      %p82 = por %p80, %p81
      %p83 = scmp.ne.s32.totalorder %s74, %s75
      %p84 = scmp.eq.s32.totalorder %s22, 0
      %p85 = por %p83, %p84
      %p86 = scmp.ne.s32.totalorder %s74, %s75
      %p87 = scmp.eq.s32.totalorder %s23, 1
      %p88 = por %p86, %p87
      %p90 = scmp.ne.s32.totalorder %s75, %s89
      %p91 = scmp.eq.s32.totalorder %s23, 0
      %p92 = por %p90, %p91
      %s94 = sadd.s32 %s93, 1
      %p97 = scmp.eq.s32.totalorder %s17, 1
      %p98 = scmp.ne.s32.totalorder %s93, %s95
      %p99 = scmp.eq.s32.totalorder %s17, 0
      %p100 = por %p98, %p99
      %p101 = scmp.ne.s32.totalorder %s93, %s95
      %p102 = scmp.eq.s32.totalorder %s22, 1
      %p103 = por %p101, %p102
      %p104 = scmp.ne.s32.totalorder %s95, %s96
      %p105 = scmp.eq.s32.totalorder %s22, 0
      %p106 = por %p104, %p105
      %p107 = scmp.ne.s32.totalorder %s95, %s96
      %p108 = scmp.eq.s32.totalorder %s23, 1
      %p109 = por %p107, %p108
      %p111 = scmp.ne.s32.totalorder %s96, %s110
      %p112 = scmp.eq.s32.totalorder %s23, 0
      %p113 = por %p111, %p112
      %s114 = ssub.s32 %s17, %s24
      %p115 = scmp.eq.s32.totalorder %s114, 0
      %s117 = sadd.s32 %s116, 1
      %s118 = scalar_select %p115, %s116, %s117
      %p121 = pneg %p115
      %p122 = scmp.eq.s32.totalorder %s17, 1
      %p123 = por %p121, %p122
      %p124 = scmp.ne.s32.totalorder %s116, %s119
      %p125 = scmp.eq.s32.totalorder %s17, 0
      %p126 = por %p124, %p125
      %p127 = scmp.ne.s32.totalorder %s116, %s119
      %p128 = scmp.eq.s32.totalorder %s22, 1
      %p129 = por %p127, %p128
      %p130 = scmp.ne.s32.totalorder %s119, %s120
      %p131 = scmp.eq.s32.totalorder %s22, 0
      %p132 = por %p130, %p131
      %p133 = scmp.ne.s32.totalorder %s119, %s120
      %p134 = scmp.eq.s32.totalorder %s23, 1
      %p135 = por %p133, %p134
      %p137 = scmp.ne.s32.totalorder %s120, %s136
      %p138 = scmp.eq.s32.totalorder %s23, 0
      %p139 = por %p137, %p138
      %p140 = scmp.le.s32.totalorder 1, %s17
      %p141 = scmp.lt.s32.totalorder %s17, 3
      %p142 = pnand %p140, %p141
      %p143 = pneg %p142
      // Predicated region
      $region9: #{_rff_pallas_resident.1} parent=5 // pred_check
        _
      $region10: #{_rff_pallas_resident.1} parent=5 // pred_check_branch
        %145 = sbr.rel (%p142) target = $region12
      $region11: #{_rff_pallas_resident.1} parent=5 // pred_region
        %s146 = ssub.s32 %s17, 1
        // Predicated region
        $region13: #{_rff_pallas_resident.1} parent=11 // pred_check
          %p147 = pneg %p64
        $region14: #{_rff_pallas_resident.1} parent=11 // pred_check_branch
          %149 = sbr.rel (%p147) target = $region16
        $region15: #{_rff_pallas_resident.1} parent=11 // pred_region
          _
        $region16: #{_rff_pallas_resident.1} parent=11 // pred_fallthru
          _
        // Predicated region
        $region17: #{_rff_pallas_resident.1} parent=11 // pred_check
          %p150 = pneg %p85
        $region18: #{_rff_pallas_resident.1} parent=11 // pred_check_branch
          %152 = sbr.rel (%p150) target = $region20
        $region19: #{_rff_pallas_resident.1} parent=11 // pred_region
          %s154 = ssub.s32 1024, 1024
          %155 = vsyncadd [#allocation6], %s154
          %s156 = sshll.u32 [#allocation5], 4
          %s157 = int_to_ptr.vmem [resolvable:$true] %s156
          %162 = dma.hbm_to_vmem [thread:$0]  %s2, 1024, %s157, [#allocation6], 256, 256, 16
        $region20: #{_rff_pallas_resident.1} parent=11 // pred_fallthru
          _
        // Predicated region
        $region21: #{_rff_pallas_resident.1} parent=11 // pred_check
          %p163 = pneg %p106
        $region22: #{_rff_pallas_resident.1} parent=11 // pred_check_branch
          %165 = sbr.rel (%p163) target = $region24
        $region23: #{_rff_pallas_resident.1} parent=11 // pred_region
          _
        $region24: #{_rff_pallas_resident.1} parent=11 // pred_fallthru
          _
      $region12: #{_rff_pallas_resident.1} parent=5 // pred_fallthru
        _
      %p166 = scmp.lt.s32.totalorder %s17, 2
      // Predicated region
      $region25: #{_rff_pallas_resident.1} parent=5 // pred_check
        %p167 = pneg %p166
      $region26: #{_rff_pallas_resident.1} parent=5 // pred_check_branch
        %169 = sbr.rel (%p167) target = $region28
      $region27: #{_rff_pallas_resident.1} parent=5 // pred_region
        // Predicated region
        $region29: #{_rff_pallas_resident.1} parent=27 // pred_check
          %p170 = pneg %p37
        $region30: #{_rff_pallas_resident.1} parent=27 // pred_check_branch
          %172 = sbr.rel (%p170) target = $region32
        $region31: #{_rff_pallas_resident.1} parent=27 // pred_region
          %s173 = sand.u32 %s27, 1
          %s174 = scalar_lea.sflag [#allocation3], %s173
          %s175 = sand.u32 %s27, 1
          %s176 = smul.addr %s175, 8
          %s177 = scalar_lea.vmem [#allocation2], %s176
          %s179 = ssub.s32 128, 128
          %180 = vsyncadd %s174, %s179
          %s181 = smul.addr %s17, 128
          %s182 = scalar_lea.hbm %s0, %s181
          %s184 = sshll.u32 %s177, 4
          %s185 = int_to_ptr.vmem [resolvable:$true] %s184
          %187 = dma.hbm_to_vmem [thread:$0]  %s182, 128, %s185, %s174
        $region32: #{_rff_pallas_resident.1} parent=27 // pred_fallthru
          _
      $region28: #{_rff_pallas_resident.1} parent=5 // pred_fallthru
        _
      %p188 = scmp.le.s32.totalorder 1, %s17
      %p189 = scmp.lt.s32.totalorder %s17, 3
      %p190 = pnand %p188, %p189
      %p191 = pneg %p190
      // Predicated region
      $region33: #{_rff_pallas_resident.1} parent=5 // pred_check
        _
      $region34: #{_rff_pallas_resident.1} parent=5 // pred_check_branch
        %193 = sbr.rel (%p190) target = $region36
      $region35: #{_rff_pallas_resident.1} parent=5 // pred_region
        %s194 = ssub.s32 %s17, 1
        %s195 = sand.u32 %s30, 1
        %s196 = scalar_lea.sflag [#allocation3], %s195
        %s197 = sand.u32 %s30, 1
        %s198 = smul.addr %s197, 8
        %s199 = scalar_lea.vmem [#allocation2], %s198
        // Predicated region
        $region37: #{_rff_pallas_resident.1} parent=35 // pred_check
          %p200 = pneg %p43
        $region38: #{_rff_pallas_resident.1} parent=35 // pred_check_branch
          %202 = sbr.rel (%p200) target = $region40
        $region39: #{_rff_pallas_resident.1} parent=35 // pred_region
          %203 = dma.done %s196, 128
        $region40: #{_rff_pallas_resident.1} parent=35 // pred_fallthru
          _
        // Predicated region
        $region41: #{_rff_pallas_resident.1} parent=35 // pred_check
          %p204 = pneg %p85
        $region42: #{_rff_pallas_resident.1} parent=35 // pred_check_branch
          %206 = sbr.rel (%p204) target = $region44
        $region43: #{_rff_pallas_resident.1} parent=35 // pred_region
          %207 = dma.done [#allocation6], 1024
        $region44: #{_rff_pallas_resident.1} parent=35 // pred_fallthru
          _
        %s208 = sand.u32 %s30, 1
        %s209 = scalar_lea.sflag [#allocation3], %s208
        %s210 = sand.u32 %s30, 1
        %s211 = smul.addr %s210, 8
        %s212 = scalar_lea.vmem [#allocation2], %s211
        %p213 = pneg %p43
        %p214 = pneg %p40
        %p215 = pneg %p64
        %p216 = pneg %p61
        %p217 = pneg %p85
        %p218 = pneg %p82
        %p219 = pneg %p106
        %p220 = pneg %p103
        %p221 = pneg %p132
        %p222 = pneg %p129
        %s223 = sand.u32 %s119, 1
        %s224 = scalar_lea.sflag [#allocation4], %s223
        %s225 = sand.u32 %s119, 1
        %s226 = smul.addr %s225, 16
        %s227 = scalar_lea.vmem [#allocation7], %s226
        %v228 = vld [vmem:[%s199] sm:$0xff]
        %v229 = vld [vmem:[%s1] sm:$0x1]
        %v231 = vlaneseq
        %v232 = vshrl.u32 %v231, 7
        %v233 = vsub.s32 0, %v232
        %v234 = vrot.slane %v229, %v233
        %v236 = vmul.f32 %v228, %v234
        %v237 = vld [vmem:[#allocation5] sm:$0xff]
        %v238 = vld [vmem:[#allocation5 + $0x8] sm:$0xff]
        %v239 = vld [vmem:[#allocation5 + $0x10] sm:$0xff]
        %v240 = vld [vmem:[#allocation5 + $0x18] sm:$0xff]
        %v241 = vld [vmem:[#allocation5 + $0x20] sm:$0xff]
        %v242 = vld [vmem:[#allocation5 + $0x28] sm:$0xff]
        %v243 = vld [vmem:[#allocation5 + $0x30] sm:$0xff]
        %v244 = vld [vmem:[#allocation5 + $0x38] sm:$0xff]
        %v245 = vld [vmem:[%s3] sm:$0x3]
        %v247 = vlaneseq
        %v248 = vshrl.u32 %v247, 7
        %v249 = vsub.s32 0, %v248
        %v250 = vrot.slane %v245, %v249
        %v251 = vlaneseq
        %v252 = vshrl.u32 %v251, 7
        %v253 = vsub.s32 1, %v252
        %v254 = vrot.slane %v245, %v253
        %vm257 = vcmask 261120
        %v259 = vsel %vm257, %v236, 0
        %261 = vmatprep.subr.mxu0 0.0
        %262 = vmatpush1.msra.mxu0 0.0
        %263 = vmatprep.subr.mxu0 0.0
        %264 = vmatpush1.msra.mxu0 0.0
        %265 = vmatprep.subr.mxu0 0.0
        %266 = vmatpush1.msra.mxu0 0.0
        %267 = vmatprep.subr.mxu0 0.0
        %268 = vmatpush1.msra.mxu0 0.0
        %269 = vmatprep.subr.mxu0 0.0
        %270 = vmatpush1.msra.mxu0 0.0
        %271 = vmatprep.subr.mxu0 0.0
        %272 = vmatpush1.msra.mxu0 0.0
        %273 = vmatprep.subr.mxu0 0.0
        %274 = vmatpush1.msra.mxu0 0.0
        %275 = vmatprep.subr.mxu0 0.0
        %276 = vmatpush1.msra.mxu0 0.0
        %277 = vmatprep.subr.mxu0 0.0
        %278 = vmatpush1.msra.mxu0 0.0
        %279 = vmatprep.subr.mxu0 0.0
        %280 = vmatpush1.msra.mxu0 0.0
        %281 = vmatprep.subr.mxu0 0.0
        %282 = vmatpush1.msra.mxu0 0.0
        %283 = vmatprep.subr.mxu0 0.0
        %284 = vmatpush1.msra.mxu0 0.0
        %285 = vmatprep.subr.mxu0 %v244
        %286 = vmatpush1.msra.mxu0 %v243
        %287 = vmatprep.subr.mxu0 %v242
        %288 = vmatpush1.msra.mxu0 %v241
        %289 = vmatprep.subr.mxu0 %v240
        %290 = vmatpush1.msra.mxu0 %v239
        %291 = vmatprep.subr.mxu0 %v238
        %292 = vmatpush1.msra.mxu0 %v237
        %293 = vmatprep.subr.mxu0 0.0
        %294 = vmatpush2.msra.mxu0 0.0
        %295 = vmatprep.subr.mxu0 0.0
        %296 = vmatpush2.msra.mxu0 0.0
        %297 = vmatprep.subr.mxu0 0.0
        %298 = vmatpush2.msra.mxu0 0.0
        %299 = vmatprep.subr.mxu0 0.0
        %300 = vmatpush2.msra.mxu0 0.0
        %301 = vmatprep.subr.mxu0 0.0
        %302 = vmatpush2.msra.mxu0 0.0
        %303 = vmatprep.subr.mxu0 0.0
        %304 = vmatpush2.msra.mxu0 0.0
        %305 = vmatprep.subr.mxu0 0.0
        %306 = vmatpush2.msra.mxu0 0.0
        %307 = vmatprep.subr.mxu0 0.0
        %308 = vmatpush2.msra.mxu0 0.0
        %309 = vmatprep.subr.mxu0 0.0
        %310 = vmatpush2.msra.mxu0 0.0
        %311 = vmatprep.subr.mxu0 0.0
        %312 = vmatpush2.msra.mxu0 0.0
        %313 = vmatprep.subr.mxu0 0.0
        %314 = vmatpush2.msra.mxu0 0.0
        %315 = vmatprep.subr.mxu0 0.0
        %316 = vmatpush2.msra.mxu0 0.0
        %317 = vmatprep.subr.mxu0 0.0
        %318 = vmatpush2.msra.mxu0 0.0
        %319 = vmatprep.subr.mxu0 0.0
        %320 = vmatpush2.msra.mxu0 0.0
        %321 = vmatprep.subr.mxu0 0.0
        %322 = vmatpush2.msra.mxu0 0.0
        %323 = vmatprep.subr.mxu0 0.0
        %324 = vmatpush2.msra.mxu0 0.0
        %325 = vmatprep.mubr.f32.mxu0 0.0
        %326 = vmatmul.mubr.f32.gmra.mxu0 %v259
        %v327 = vpop.f32.mrf.mxu0
        %v328 = vadd.f32 %v250, %v327
        %v329 = vpop.f32.mrf.mxu0
        %v330 = vadd.f32 %v254, %v329
        %331 = vdwg.mxu0
        %v332 = vand.u32 2147483647, %v328
        %vm333 = vcmp.le.f32.partialorder %v332, 0.7853982
        %vm334 = vcmp.lt.s32.totalorder %v328, 0
        %v335 = vand.u32 %v328, 2139095040
        %v336 = vshrl.u32 %v335, 23
        %v337 = vsub.s32 %v336, 127
        %v338 = vand.u32 2147483647, %v328
        %v339 = vand.u32 %v338, 8388607
        %v340 = vor.u32 %v339, 8388608
        %v341 = vsub.s32 0, %v340
        %v342 = vadd.s32 %v337, 1
        %vm343 = vcmp.gt.s32.totalorder %v342, 0
        %v344 = vsel %vm343, %v342, 0
        %v345 = vshrl.u32 %v344, 5
        %v346 = vand.u32 %v344, 31
        %v347 = vsub.s32 32, %v346
        %v348 = vshrl.u32 683565275, %v347
        %v349 = vshll.u32 683565275, %v346
        %v350 = vshrl.u32 2475754826, %v347
        %v351 = vor.u32 %v349, %v350
        %v352 = vshll.u32 2475754826, %v346
        %v353 = vshrl.u32 2131351028, %v347
        %v354 = vor.u32 %v352, %v353
        %v355 = vshll.u32 2131351028, %v346
        %v356 = vshrl.u32 2102212464, %v347
        %v357 = vor.u32 %v355, %v356
        %v358 = vshll.u32 2102212464, %v346
        %v359 = vshrl.u32 920167782, %v347
        %v360 = vor.u32 %v358, %v359
        %v361 = vshll.u32 920167782, %v346
        %v362 = vshrl.u32 1326507024, %v347
        %v363 = vor.u32 %v361, %v362
        %vm364 = vcmp.lt.s32.totalorder %v345, 1
        %vm365 = vcmp.lt.s32.totalorder %v345, 2
        %vm366 = vcmp.lt.s32.totalorder %v345, 3
        %vm367 = vcmp.lt.s32.totalorder %v345, 4
        %v368 = vsel %vm364, %v348, %v351
        %v369 = vsel %vm367, %v357, 2102212464
        %v370 = vsel %vm366, %v354, %v369
        %v371 = vsel %vm365, %v368, %v370
        %v372 = vsel %vm364, %v351, %v354
        %v373 = vsel %vm367, %v360, 920167782
        %v374 = vsel %vm366, %v357, %v373
        %v375 = vsel %vm365, %v372, %v374
        %v376 = vsel %vm364, %v354, %v357
        %v377 = vsel %vm367, %v363, 1326507024
        %v378 = vsel %vm366, %v360, %v377
        %v379 = vsel %vm365, %v376, %v378
        %v380 = vshll.u32 %v340, 8
        %v381 = vmul.u32.u64.compose %v380, %v379
        %v382 = vextract.low.u32 %v381
        %v383 = vextract.high.u32 %v381
        %v384 = vmul.u32.u64.compose %v380, %v375
        %v385 = vextract.low.u32 %v384
        %v386 = vextract.high.u32 %v384
        %v387 = vmul.u32 %v380, %v371
        %v388 = vadd.s32 %v383, %v385
        %vm389 = vc.u32 %v383, %v385
        %v390 = vadd.s32 %v386, 1
        %v391 = vsel %vm389, %v390, %v386
        %v392 = vadd.s32 %v387, %v391
        %v393 = vadd.s32 %v392, 536870912
        %v394 = vshrl.u32 %v393, 30
        %v395 = vshll.u32 %v394, 30
        %v396 = vsub.s32 %v392, %v395
        %vm397 = vcmp.lt.s32.totalorder %v396, 0
        %v398 = vsub.s32 0, %v396
        %v399 = vsel %vm397, %v398, %v396
        %v400 = vclz %v399
        %v401 = vsub.s32 %v400, 2
        %vm402 = vcmp.gt.s32.totalorder 0, %v401
        %v403 = vsel %vm402, 0, %v401
        %v404 = vsub.s32 32, %v403
        %v405 = vshll.u32 %v396, %v403
        %v406 = vshrl.u32 %v388, %v404
        %v407 = vor.u32 %v405, %v406
        %v408 = vsub.s32 4294967266, %v403
        %v409 = vadd.s32 %v408, 127
        %v410 = vshll.u32 %v409, 23
        %v411 = vor.u32 4788187, %v410
        %v412 = vand.u32 2147483647, %v411
        %v414 = vcvt.s32.f32 %v407
        %v415 = vmul.f32 %v414, %v412
        %v416 = vxor.u32 %v415, 2147483648
        %v417 = vsel %vm334, %v416, %v415
        %v418 = vsub.s32 4, %v394
        %v419 = vsel %vm334, %v418, %v394
        %v420 = vsel %vm333, %v328, %v417
        %v421 = vsel %vm333, 0, %v419
        %v422 = vcosq.f32.pop %v420
        %v423 = vsinq.f32.pop %v420
        %vm424 = vweird.f32 %v328
        %v425 = vand.u32 %v421, 3
        %vm426 = vcmp.lt.s32.totalorder %v425, 2
        %vm427 = vcmp.eq.s32.totalorder %v425, 0
        %v428 = vxor.u32 %v423, 2147483648
        %v429 = vsel %vm427, %v422, %v428
        %vm430 = vcmp.eq.s32.totalorder %v425, 2
        %v431 = vxor.u32 %v422, 2147483648
        %v432 = vsel %vm430, %v431, %v423
        %v433 = vsel %vm426, %v429, %v432
        %v434 = vsel %vm424, nan, %v433
        %v435 = vand.u32 2147483647, %v330
        %vm436 = vcmp.le.f32.partialorder %v435, 0.7853982
        %vm437 = vcmp.lt.s32.totalorder %v330, 0
        %v438 = vand.u32 %v330, 2139095040
        %v439 = vshrl.u32 %v438, 23
        %v440 = vsub.s32 %v439, 127
        %v441 = vand.u32 2147483647, %v330
        %v442 = vand.u32 %v441, 8388607
        %v443 = vor.u32 %v442, 8388608
        %v444 = vsub.s32 0, %v443
        %v445 = vadd.s32 %v440, 1
        %vm446 = vcmp.gt.s32.totalorder %v445, 0
        %v447 = vsel %vm446, %v445, 0
        %v448 = vshrl.u32 %v447, 5
        %v449 = vand.u32 %v447, 31
        %v450 = vsub.s32 32, %v449
        %v451 = vshrl.u32 683565275, %v450
        %v452 = vshll.u32 683565275, %v449
        %v453 = vshrl.u32 2475754826, %v450
        %v454 = vor.u32 %v452, %v453
        %v455 = vshll.u32 2475754826, %v449
        %v456 = vshrl.u32 2131351028, %v450
        %v457 = vor.u32 %v455, %v456
        %v458 = vshll.u32 2131351028, %v449
        %v459 = vshrl.u32 2102212464, %v450
        %v460 = vor.u32 %v458, %v459
        %v461 = vshll.u32 2102212464, %v449
        %v462 = vshrl.u32 920167782, %v450
        %v463 = vor.u32 %v461, %v462
        %v464 = vshll.u32 920167782, %v449
        %v465 = vshrl.u32 1326507024, %v450
        %v466 = vor.u32 %v464, %v465
        %vm467 = vcmp.lt.s32.totalorder %v448, 1
        %vm468 = vcmp.lt.s32.totalorder %v448, 2
        %vm469 = vcmp.lt.s32.totalorder %v448, 3
        %vm470 = vcmp.lt.s32.totalorder %v448, 4
        %v471 = vsel %vm467, %v451, %v454
        %v472 = vsel %vm470, %v460, 2102212464
        %v473 = vsel %vm469, %v457, %v472
        %v474 = vsel %vm468, %v471, %v473
        %v475 = vsel %vm467, %v454, %v457
        %v476 = vsel %vm470, %v463, 920167782
        %v477 = vsel %vm469, %v460, %v476
        %v478 = vsel %vm468, %v475, %v477
        %v479 = vsel %vm467, %v457, %v460
        %v480 = vsel %vm470, %v466, 1326507024
        %v481 = vsel %vm469, %v463, %v480
        %v482 = vsel %vm468, %v479, %v481
        %v483 = vshll.u32 %v443, 8
        %v484 = vmul.u32.u64.compose %v483, %v482
        %v485 = vextract.low.u32 %v484
        %v486 = vextract.high.u32 %v484
        %v487 = vmul.u32.u64.compose %v483, %v478
        %v488 = vextract.low.u32 %v487
        %v489 = vextract.high.u32 %v487
        %v490 = vmul.u32 %v483, %v474
        %v491 = vadd.s32 %v486, %v488
        %vm492 = vc.u32 %v486, %v488
        %v493 = vadd.s32 %v489, 1
        %v494 = vsel %vm492, %v493, %v489
        %v495 = vadd.s32 %v490, %v494
        %v496 = vadd.s32 %v495, 536870912
        %v497 = vshrl.u32 %v496, 30
        %v498 = vshll.u32 %v497, 30
        %v499 = vsub.s32 %v495, %v498
        %vm500 = vcmp.lt.s32.totalorder %v499, 0
        %v501 = vsub.s32 0, %v499
        %v502 = vsel %vm500, %v501, %v499
        %v503 = vclz %v502
        %v504 = vsub.s32 %v503, 2
        %vm505 = vcmp.gt.s32.totalorder 0, %v504
        %v506 = vsel %vm505, 0, %v504
        %v507 = vsub.s32 32, %v506
        %v508 = vshll.u32 %v499, %v506
        %v509 = vshrl.u32 %v491, %v507
        %v510 = vor.u32 %v508, %v509
        %v511 = vsub.s32 4294967266, %v506
        %v512 = vadd.s32 %v511, 127
        %v513 = vshll.u32 %v512, 23
        %v514 = vor.u32 4788187, %v513
        %v515 = vand.u32 2147483647, %v514
        %v517 = vcvt.s32.f32 %v510
        %v518 = vmul.f32 %v517, %v515
        %v519 = vxor.u32 %v518, 2147483648
        %v520 = vsel %vm437, %v519, %v518
        %v521 = vsub.s32 4, %v497
        %v522 = vsel %vm437, %v521, %v497
        %v523 = vsel %vm436, %v330, %v520
        %v524 = vsel %vm436, 0, %v522
        %v525 = vcosq.f32.pop %v523
        %v526 = vsinq.f32.pop %v523
        %vm527 = vweird.f32 %v330
        %v528 = vand.u32 %v524, 3
        %vm529 = vcmp.lt.s32.totalorder %v528, 2
        %vm530 = vcmp.eq.s32.totalorder %v528, 0
        %v531 = vxor.u32 %v526, 2147483648
        %v532 = vsel %vm530, %v525, %v531
        %vm533 = vcmp.eq.s32.totalorder %v528, 2
        %v534 = vxor.u32 %v525, 2147483648
        %v535 = vsel %vm533, %v534, %v526
        %v536 = vsel %vm529, %v532, %v535
        %v537 = vsel %vm527, nan, %v536
        %538 = vst [vmem:[%s227] sm:$0xff] %v434
        %539 = vst [vmem:[%s227 + $0x8] sm:$0xff] %v537
        %s540 = sand.u32 %s119, 1
        %s541 = scalar_lea.sflag [#allocation4], %s540
        %s542 = sand.u32 %s119, 1
        %s543 = smul.addr %s542, 16
        %s544 = scalar_lea.vmem [#allocation7], %s543
        // Predicated region
        $region45: #{_rff_pallas_resident.1} parent=35 // pred_check
          %p545 = pneg %p129
        $region46: #{_rff_pallas_resident.1} parent=35 // pred_check_branch
          %547 = sbr.rel (%p545) target = $region48
        $region47: #{_rff_pallas_resident.1} parent=35 // pred_region
          %s549 = ssub.s32 256, 256
          %550 = vsyncadd %s541, %s549
          %s551 = smul.addr %s22, 2
          %s552 = smul.addr %s551, 128
          %s553 = scalar_lea.hbm %s4, %s552
          %s555 = sshll.u32 %s544, 4
          %s556 = int_to_ptr.vmem [resolvable:$true] %s555
          %558 = dma.vmem_to_hbm [thread:$0]  %s556, 256, %s553, %s541
        $region48: #{_rff_pallas_resident.1} parent=35 // pred_fallthru
          _
      $region36: #{_rff_pallas_resident.1} parent=5 // pred_fallthru
        _
      %p559 = scmp.le.s32.totalorder 2, %s17
      // Predicated region
      $region49: #{_rff_pallas_resident.1} parent=5 // pred_check
        %p560 = pneg %p559
      $region50: #{_rff_pallas_resident.1} parent=5 // pred_check_branch
        %562 = sbr.rel (%p560) target = $region52
      $region51: #{_rff_pallas_resident.1} parent=5 // pred_region
        %s563 = ssub.s32 %s17, 2
        // Predicated region
        $region53: #{_rff_pallas_resident.1} parent=51 // pred_check
          %p564 = pneg %p135
        $region54: #{_rff_pallas_resident.1} parent=51 // pred_check_branch
          %566 = sbr.rel (%p564) target = $region56
        $region55: #{_rff_pallas_resident.1} parent=51 // pred_region
          %s567 = sand.u32 %s120, 1
          %s568 = scalar_lea.sflag [#allocation4], %s567
          %s569 = sand.u32 %s120, 1
          %s570 = smul.addr %s569, 16
          %s571 = scalar_lea.vmem [#allocation7], %s570
          %572 = dma.done %s568, 256
        $region56: #{_rff_pallas_resident.1} parent=51 // pred_fallthru
          _
      $region52: #{_rff_pallas_resident.1} parent=5 // pred_fallthru
        _
    $region6: #{_rff_pallas_resident.1} parent=1 // loop_footer
      %s21 = sadd.s32 1, %s17
    $region7: #{_rff_pallas_resident.1} parent=1 // loop_footer_branch
      %16 = sbr.rel target = $region3
    $region8: #{_rff_pallas_resident.1} parent=1 // loop_exit
      _
    %573 = vsyncpa [#allocation3], 1
    %s574 = scalar_lea.sflag [#allocation3], 1
    %575 = vsyncpa %s574, 1
    %576 = vsyncpa [#allocation6], 1
    %577 = vsyncpa [#allocation4], 1
    %s578 = scalar_lea.sflag [#allocation4], 1
    %579 = vsyncpa %s578, 1

</llo_original>
